<compile_context>
chip_gen: v5e
topology: v5e:2x2
jax: 0.10.0
libtpu: 0.0.40
codegen_flags: <defaults>
</compile_context>

<pallas_src>
import functools

import jax
import jax.numpy as jnp
from jax.experimental import pallas as pl
from jax.experimental.pallas import tpu as pltpu

LN_EPS = 1e-5


def _round_up(x: int, m: int) -> int:
    return ((x + m - 1) // m) * m


def _use_reordered(in_dim: int, out_dim: int) -> bool:
    """Reorder to A @ (X @ W) when the output feature dim is not wider."""
    return _round_up(out_dim, 128) <= _round_up(in_dim, 128)


def _vmem_estimate(tn: int, n_pad: int, in_pad: int, out_pad: int,
                   reorder: bool) -> int:
    """Rough VMEM footprint (bytes) for one grid step (double-buffered inputs)."""
    bf16, f32 = 2, 4
    vvgs_tile = 2 * tn * n_pad * bf16
    x_tile = 2 * n_pad * in_pad * bf16
    w_tile = 2 * in_pad * out_pad * bf16
    vec_tiles = 2 * 3 * out_pad * f32
    out_tile = 2 * tn * out_pad * f32
    scratch = n_pad * out_pad * bf16 if reorder else 0
    return vvgs_tile + x_tile + w_tile + vec_tiles + out_tile + scratch


def _pick_row_tile(N: int, in_pad: int, out_pad: int, reorder: bool,
                   budget_bytes: int):
    """Largest TN in {512,...,8} (multiple of 8) that fits the VMEM budget."""
    n8 = _round_up(N, 8)
    for tn in (512, 256, 128, 64, 32, 16, 8):
        if tn > n8:
            continue
        n_pad = _round_up(N, tn)
        if _vmem_estimate(tn, n_pad, in_pad, out_pad, reorder) <= budget_bytes:
            return tn, n_pad
    return 8, _round_up(N, 8)


def _layer_norm_relu(z, gamma, beta, out_dim):
    """LayerNorm over the valid out_dim columns (+affine), then ReLU.

    Padded feature columns of `z` are exactly zero (zero weight columns, zero
    bias), so the raw row-sum already equals the sum over valid columns; only
    the centered values need masking (padded cols would become -mean).
    """
    inv_d = 1.0 / float(out_dim)
    mean = jnp.sum(z, axis=-1, keepdims=True) * inv_d
    if out_dim == z.shape[-1]:
        cent = z - mean
    else:
        col = jax.lax.broadcasted_iota(jnp.int32, z.shape, 1)
        cent = jnp.where(col < out_dim, z - mean, 0.0)
    var = jnp.sum(cent * cent, axis=-1, keepdims=True) * inv_d
    zn = cent * jax.lax.rsqrt(var + LN_EPS)
    zn = zn * gamma + beta
    return jnp.maximum(zn, 0.0)


def gcn_kernel_reordered(a_ref, x_ref, w_ref, b_ref, g_ref, beta_ref, o_ref,
                         xw_ref, *, out_dim):
    # a_ref:    (1, TN, N_pad)      bf16   row tile of this batch's adjacency
    # x_ref:    (1, N_pad, in_pad)  bf16   this batch's token embeddings (resident)
    # w_ref:    (in_pad, out_pad)   bf16   Linear weight, pre-transposed
    # b/g/beta: (1, out_pad)        f32
    # o_ref:    (1, TN, out_pad)    f32
    # xw_ref:   (N_pad, out_pad)    bf16   scratch: X @ W for the current batch

    # Compute X @ W once per batch (first row tile); reuse for all row tiles.
    @pl.when(pl.program_id(1) == 0)
    def _():
        xw = jnp.dot(x_ref[0], w_ref[...], preferred_element_type=jnp.float32)
        xw_ref[...] = xw.astype(xw_ref.dtype)

    # A_tile @ (X @ W) : bf16 operands, f32 accumulation (MXU).
    z = jnp.dot(a_ref[0], xw_ref[...], preferred_element_type=jnp.float32)
    z = z + b_ref[...]                                            # (TN, out_pad)
    o_ref[0] = _layer_norm_relu(z, g_ref[...], beta_ref[...],
                                out_dim).astype(o_ref.dtype)


def gcn_kernel_fused(a_ref, x_ref, w_ref, b_ref, g_ref, beta_ref, o_ref,
                     *, out_dim):
    # Original association (used when out_pad > in_pad): (A @ X) @ W.
    h = jnp.dot(a_ref[0], x_ref[0], preferred_element_type=jnp.float32)
    z = jnp.dot(h.astype(jnp.bfloat16), w_ref[...],
                preferred_element_type=jnp.float32)
    z = z + b_ref[...]
    o_ref[0] = _layer_norm_relu(z, g_ref[...], beta_ref[...],
                                out_dim).astype(o_ref.dtype)


def batched_gcn_conv(vvgs, token_embs, weight, bias, gamma, beta):
    """vvgs: (B,N,N); token_embs: (B,N,in_dim); weight: (out_dim,in_dim);
    bias/gamma/beta: (out_dim,). Returns (B, N, out_dim) f32."""
    B, N, _ = vvgs.shape
    in_dim = token_embs.shape[-1]
    out_dim = weight.shape[0]

    # Lane-dense padding for the contraction / output feature dims.
    in_pad = _round_up(in_dim, 128)
    out_pad = _round_up(out_dim, 128)
    reorder = _use_reordered(in_dim, out_dim)

    # Row tile over the node dimension, bounded by a conservative VMEM budget.
    TN, N_pad = _pick_row_tile(N, in_pad, out_pad, reorder,
                               budget_bytes=36 * 1024 * 1024)
    est = _vmem_estimate(TN, N_pad, in_pad, out_pad, reorder)
    vmem_limit = min(max(2 * est, 32 * 1024 * 1024), 48 * 1024 * 1024)

    # bf16 matmul operands (halves HBM traffic of the dominant (B,N,N) stream);
    # everything post-matmul stays f32 inside the kernel.
    vvgs_p = jnp.pad(vvgs.astype(jnp.float32),
                     ((0, 0), (0, N_pad - N), (0, N_pad - N))).astype(jnp.bfloat16)
    x_p = jnp.pad(token_embs.astype(jnp.float32),
                  ((0, 0), (0, N_pad - N), (0, in_pad - in_dim))).astype(jnp.bfloat16)
    w_p = jnp.pad(weight.T.astype(jnp.float32),
                  ((0, in_pad - in_dim), (0, out_pad - out_dim))).astype(jnp.bfloat16)
    b_p = jnp.pad(bias.astype(jnp.float32), (0, out_pad - out_dim)).reshape(1, out_pad)
    g_p = jnp.pad(gamma.astype(jnp.float32), (0, out_pad - out_dim)).reshape(1, out_pad)
    be_p = jnp.pad(beta.astype(jnp.float32), (0, out_pad - out_dim)).reshape(1, out_pad)

    if reorder:
        kernel = functools.partial(gcn_kernel_reordered, out_dim=out_dim)
        scratch_shapes = [pltpu.VMEM((N_pad, out_pad), jnp.bfloat16)]
        # Row tiles of a batch must run in order (r == 0 fills the XW scratch).
        dims = ("parallel", "arbitrary")
    else:
        kernel = functools.partial(gcn_kernel_fused, out_dim=out_dim)
        scratch_shapes = []
        dims = ("parallel", "parallel")

    out_padded = pl.pallas_call(
        kernel,
        out_shape=jax.ShapeDtypeStruct((B, N_pad, out_pad), jnp.float32),
        grid_spec=pltpu.PrefetchScalarGridSpec(
            num_scalar_prefetch=0,
            grid=(B, N_pad // TN),
            in_specs=[
                pl.BlockSpec((1, TN, N_pad), lambda b, r: (b, r, 0)),      # vvgs tile
                pl.BlockSpec((1, N_pad, in_pad), lambda b, r: (b, 0, 0)),  # x (per batch)
                pl.BlockSpec((in_pad, out_pad), lambda b, r: (0, 0)),      # W^T
                pl.BlockSpec((1, out_pad), lambda b, r: (0, 0)),           # bias
                pl.BlockSpec((1, out_pad), lambda b, r: (0, 0)),           # gamma
                pl.BlockSpec((1, out_pad), lambda b, r: (0, 0)),           # beta
            ],
            out_specs=pl.BlockSpec((1, TN, out_pad), lambda b, r: (b, r, 0)),
            scratch_shapes=scratch_shapes,
        ),
        compiler_params=pltpu.CompilerParams(
            dimension_semantics=dims,
            vmem_limit_bytes=vmem_limit,
        ),
    )(vvgs_p, x_p, w_p, b_p, g_p, be_p)

    return out_padded[:, :N, :out_dim]


def reference_f32(vvgs, token_embs, weight, bias, gamma, beta):
    out = jnp.einsum("bij,bjd->bid", vvgs, token_embs)
    out = out @ weight.T + bias
    mean = jnp.mean(out, axis=-1, keepdims=True)
    var = jnp.mean((out - mean) ** 2, axis=-1, keepdims=True)
    out = (out - mean) / jnp.sqrt(var + LN_EPS) * gamma + beta
    return jnp.maximum(out, 0.0)


def reference_bf16_matched(vvgs, token_embs, weight, bias, gamma, beta, reorder):
    # Mirrors the kernel's precision choices (bf16 operands, f32 accumulation)
    # and matmul association order.
    a = vvgs.astype(jnp.bfloat16)
    x = token_embs.astype(jnp.bfloat16)
    w = weight.T.astype(jnp.bfloat16)
    if reorder:
        xw = jnp.einsum("bnd,de->bne", x, w,
                        preferred_element_type=jnp.float32).astype(jnp.bfloat16)
        z = jnp.einsum("bij,bje->bie", a, xw,
                       preferred_element_type=jnp.float32) + bias
    else:
        h = jnp.einsum("bij,bjd->bid", a, x, preferred_element_type=jnp.float32)
        z = jnp.einsum("bid,de->bie", h.astype(jnp.bfloat16), w,
                       preferred_element_type=jnp.float32) + bias
    mean = jnp.mean(z, axis=-1, keepdims=True)
    cent = z - mean
    var = jnp.mean(cent * cent, axis=-1, keepdims=True)
    zn = cent * jax.lax.rsqrt(var + LN_EPS) * gamma + beta
    return jnp.maximum(zn, 0.0)


if __name__ == "__main__":
    key = jax.random.PRNGKey(0)
    B, N, in_dim, out_dim = 2, 16, 32, 32

    k1, k2, k3, k4 = jax.random.split(key, 4)
    vvgs = jax.random.normal(k1, (B, N, N), jnp.float32)
    token_embs = jax.random.normal(k2, (B, N, in_dim), jnp.float32)

    # nn.Linear params: weight (out_dim, in_dim), bias (out_dim,)
    wbound = jnp.sqrt(6.0 / in_dim)
    weight = jax.random.uniform(k3, (out_dim, in_dim), jnp.float32, -wbound, wbound)
    bbound = 1.0 / jnp.sqrt(in_dim)
    bias = jax.random.uniform(k4, (out_dim,), jnp.float32, -bbound, bbound)

    # nn.LayerNorm default affine init
    gamma = jnp.ones((out_dim,), jnp.float32)
    beta = jnp.zeros((out_dim,), jnp.float32)

    out = batched_gcn_conv(vvgs, token_embs, weight, bias, gamma, beta)
    out = jax.block_until_ready(out)
    assert out.shape == (B, N, out_dim)

    # Tight check against a precision-matched reference (same matmul order/dtypes).
    reorder = _use_reordered(in_dim, out_dim)
    ref_m = reference_bf16_matched(vvgs, token_embs, weight, bias, gamma, beta, reorder)
    assert jnp.allclose(out, ref_m, atol=1e-2, rtol=1e-2), (
        float(jnp.max(jnp.abs(out - ref_m))))

    # Loose check against the full-f32 module semantics (bf16 rounding slack).
    ref = reference_f32(vvgs, token_embs, weight, bias, gamma, beta)
    assert jnp.allclose(out, ref, atol=5e-2, rtol=5e-2), (
        float(jnp.max(jnp.abs(out - ref))))

    print("KERNEL_OK")
</pallas_src>

<mosaic_0001>
module attributes {stable_mosaic.version = 11 : i64} {
  func.func @gcn_kernel_reordered(%arg0: i32, %arg1: i32, %arg2: memref<1x16x16xbf16, #tpu.memory_space<vmem>>, %arg3: memref<1x16x128xbf16, #tpu.memory_space<vmem>>, %arg4: memref<128x128xbf16, #tpu.memory_space<vmem>>, %arg5: memref<1x128xf32, #tpu.memory_space<vmem>>, %arg6: memref<1x128xf32, #tpu.memory_space<vmem>>, %arg7: memref<1x128xf32, #tpu.memory_space<vmem>>, %arg8: memref<1x16x128xf32, #tpu.memory_space<vmem>>, %arg9: memref<16x128xbf16, #tpu.memory_space<vmem>>) attributes {dimension_semantics = [#tpu.dimension_semantics<parallel>, #tpu.dimension_semantics<arbitrary>], iteration_bounds = array<i64: 2, 1>, scalar_prefetch = 0 : i64, scratch_operands = 1 : i64, tpu.core_type = #tpu.core_type<tc>, window_params = [{transform_indices = @transform_0, window_bounds = array<i64: 1, 16, 16>}, {transform_indices = @transform_1, window_bounds = array<i64: 1, 16, 128>}, {pipeline_mode = #tpu.pipeline_mode<synchronous>, transform_indices = @transform_2, window_bounds = array<i64: 128, 128>}, {pipeline_mode = #tpu.pipeline_mode<synchronous>, transform_indices = @transform_3, window_bounds = array<i64: 1, 128>}, {pipeline_mode = #tpu.pipeline_mode<synchronous>, transform_indices = @transform_4, window_bounds = array<i64: 1, 128>}, {pipeline_mode = #tpu.pipeline_mode<synchronous>, transform_indices = @transform_5, window_bounds = array<i64: 1, 128>}, {transform_indices = @transform_6, window_bounds = array<i64: 1, 16, 128>}]} {
    %c0_i32 = arith.constant 0 : i32
    %0 = arith.cmpi eq, %arg1, %c0_i32 : i32
    %1 = arith.extui %0 : i1 to i32
    %c0_i32_0 = arith.constant 0 : i32
    %2 = arith.cmpi ne, %1, %c0_i32_0 : i32
    scf.if %2 {
      %c0_21 = arith.constant 0 : index
      %c0_22 = arith.constant 0 : index
      %c0_23 = arith.constant 0 : index
      %42 = vector.load %arg3[%c0_21, %c0_22, %c0_23] : memref<1x16x128xbf16, #tpu.memory_space<vmem>>, vector<1x16x128xbf16>
      %43 = vector.shape_cast %42 : vector<1x16x128xbf16> to vector<16x128xbf16>
      %c0_24 = arith.constant 0 : index
      %c0_25 = arith.constant 0 : index
      %44 = vector.load %arg4[%c0_24, %c0_25] : memref<128x128xbf16, #tpu.memory_space<vmem>>, vector<128x128xbf16>
      %cst_26 = arith.constant dense<0.000000e+00> : vector<16x128xf32>
      %45 = tpu.matmul %43, %44, %cst_26 {dimension_numbers = #tpu.dot_dimension_numbers<[1], [0], [0], [1], [0, 0, 1, 1], [], []>} : vector<16x128xbf16>, vector<128x128xbf16>, vector<16x128xf32> -> vector<16x128xf32>
      %46 = arith.truncf %45 : vector<16x128xf32> to vector<16x128xbf16>
      %c0_27 = arith.constant 0 : index
      %c0_28 = arith.constant 0 : index
      %47 = vector.load %arg9[%c0_27, %c0_28] : memref<16x128xbf16, #tpu.memory_space<vmem>>, vector<16x128xbf16>
      tpu.vector_store %arg9[%c0_27, %c0_28], %46 {strides = array<i32>} : memref<16x128xbf16, #tpu.memory_space<vmem>>, vector<16x128xbf16>,
    } else {
    }
    %c0 = arith.constant 0 : index
    %c0_1 = arith.constant 0 : index
    %c0_2 = arith.constant 0 : index
    %3 = vector.load %arg2[%c0, %c0_1, %c0_2] : memref<1x16x16xbf16, #tpu.memory_space<vmem>>, vector<1x16x16xbf16>
    %4 = vector.shape_cast %3 : vector<1x16x16xbf16> to vector<16x16xbf16>
    %c0_3 = arith.constant 0 : index
    %c0_4 = arith.constant 0 : index
    %5 = vector.load %arg9[%c0_3, %c0_4] : memref<16x128xbf16, #tpu.memory_space<vmem>>, vector<16x128xbf16>
    %cst = arith.constant dense<0.000000e+00> : vector<16x128xf32>
    %6 = tpu.matmul %4, %5, %cst {dimension_numbers = #tpu.dot_dimension_numbers<[1], [0], [0], [1], [0, 0, 1, 1], [], []>} : vector<16x16xbf16>, vector<16x128xbf16>, vector<16x128xf32> -> vector<16x128xf32>
    %c0_5 = arith.constant 0 : index
    %c0_6 = arith.constant 0 : index
    %7 = vector.load %arg5[%c0_5, %c0_6] : memref<1x128xf32, #tpu.memory_space<vmem>>, vector<1x128xf32>
    %8 = vector.broadcast %7 : vector<1x128xf32> to vector<16x128xf32>
    %9 = arith.addf %6, %8 : vector<16x128xf32>
    %c0_7 = arith.constant 0 : index
    %c0_8 = arith.constant 0 : index
    %10 = vector.load %arg6[%c0_7, %c0_8] : memref<1x128xf32, #tpu.memory_space<vmem>>, vector<1x128xf32>
    %c0_9 = arith.constant 0 : index
    %c0_10 = arith.constant 0 : index
    %11 = vector.load %arg7[%c0_9, %c0_10] : memref<1x128xf32, #tpu.memory_space<vmem>>, vector<1x128xf32>
    %cst_11 = arith.constant dense<0.000000e+00> : vector<16xf32>
    %12 = vector.multi_reduction <add>, %9, %cst_11 [1] : vector<16x128xf32> to vector<16xf32>
    %13 = vector.shape_cast %12 : vector<16xf32> to vector<16x1xf32>
    %cst_12 = arith.constant 3.125000e-02 : f32
    %14 = vector.broadcast %cst_12 : f32 to vector<16x1xf32>
    %15 = arith.mulf %13, %14 : vector<16x1xf32>
    %16 = tpu.iota {dimensions = array<i32: 1>} : vector<16x128xi32>
    %c32_i32 = arith.constant 32 : i32
    %17 = vector.broadcast %c32_i32 : i32 to vector<16x128xi32>
    %18 = arith.cmpi slt, %16, %17 : vector<16x128xi32>
    %19 = vector.broadcast %15 : vector<16x1xf32> to vector<16x128xf32>
    %20 = arith.subf %9, %19 : vector<16x128xf32>
    %cst_13 = arith.constant 0.000000e+00 : f32
    %21 = vector.broadcast %cst_13 : f32 to vector<16x128xf32>
    %22 = arith.select %18, %20, %21 : vector<16x128xi1>, vector<16x128xf32>
    %23 = arith.mulf %22, %22 : vector<16x128xf32>
    %cst_14 = arith.constant dense<0.000000e+00> : vector<16xf32>
    %24 = vector.multi_reduction <add>, %23, %cst_14 [1] : vector<16x128xf32> to vector<16xf32>
    %25 = vector.shape_cast %24 : vector<16xf32> to vector<16x1xf32>
    %cst_15 = arith.constant 3.125000e-02 : f32
    %26 = vector.broadcast %cst_15 : f32 to vector<16x1xf32>
    %27 = arith.mulf %25, %26 : vector<16x1xf32>
    %cst_16 = arith.constant 9.99999974E-6 : f32
    %28 = vector.broadcast %cst_16 : f32 to vector<16x1xf32>
    %29 = arith.addf %27, %28 : vector<16x1xf32>
    %30 = math.rsqrt %29 : vector<16x1xf32>
    %31 = vector.broadcast %30 : vector<16x1xf32> to vector<16x128xf32>
    %32 = arith.mulf %22, %31 : vector<16x128xf32>
    %33 = vector.broadcast %10 : vector<1x128xf32> to vector<16x128xf32>
    %34 = arith.mulf %32, %33 : vector<16x128xf32>
    %35 = vector.broadcast %11 : vector<1x128xf32> to vector<16x128xf32>
    %36 = arith.addf %34, %35 : vector<16x128xf32>
    %cst_17 = arith.constant 0.000000e+00 : f32
    %37 = vector.broadcast %cst_17 : f32 to vector<16x128xf32>
    %38 = arith.maximumf %36, %37 : vector<16x128xf32>
    %c0_18 = arith.constant 0 : index
    %c0_19 = arith.constant 0 : index
    %c0_20 = arith.constant 0 : index
    %39 = vector.load %arg8[%c0_18, %c0_19, %c0_20] : memref<1x16x128xf32, #tpu.memory_space<vmem>>, vector<1x16x128xf32>
    %40 = vector.shape_cast %39 : vector<1x16x128xf32> to vector<16x128xf32>
    %41 = vector.shape_cast %38 : vector<16x128xf32> to vector<1x16x128xf32>
    tpu.vector_store %arg8[%c0_18, %c0_19, %c0_20], %41 {strides = array<i32>} : memref<1x16x128xf32, #tpu.memory_space<vmem>>, vector<1x16x128xf32>,
    return
  }
  func.func @transform_0(%arg0: i32, %arg1: i32) -> (i32, i32, i32) {
    %c0_i32 = arith.constant 0 : i32
    %c0_i32_0 = arith.constant 0 : i32
    return %arg0, %arg1, %c0_i32 : i32, i32, i32
  }
  func.func @transform_1(%arg0: i32, %arg1: i32) -> (i32, i32, i32) {
    %c0_i32 = arith.constant 0 : i32
    %c0_i32_0 = arith.constant 0 : i32
    %c0_i32_1 = arith.constant 0 : i32
    return %arg0, %c0_i32, %c0_i32_0 : i32, i32, i32
  }
  func.func @transform_2(%arg0: i32, %arg1: i32) -> (i32, i32) {
    %c0_i32 = arith.constant 0 : i32
    %c0_i32_0 = arith.constant 0 : i32
    %c0_i32_1 = arith.constant 0 : i32
    return %c0_i32, %c0_i32_0 : i32, i32
  }
  func.func @transform_3(%arg0: i32, %arg1: i32) -> (i32, i32) {
    %c0_i32 = arith.constant 0 : i32
    %c0_i32_0 = arith.constant 0 : i32
    %c0_i32_1 = arith.constant 0 : i32
    return %c0_i32, %c0_i32_0 : i32, i32
  }
  func.func @transform_4(%arg0: i32, %arg1: i32) -> (i32, i32) {
    %c0_i32 = arith.constant 0 : i32
    %c0_i32_0 = arith.constant 0 : i32
    %c0_i32_1 = arith.constant 0 : i32
    return %c0_i32, %c0_i32_0 : i32, i32
  }
  func.func @transform_5(%arg0: i32, %arg1: i32) -> (i32, i32) {
    %c0_i32 = arith.constant 0 : i32
    %c0_i32_0 = arith.constant 0 : i32
    %c0_i32_1 = arith.constant 0 : i32
    return %c0_i32, %c0_i32_0 : i32, i32
  }
  func.func @transform_6(%arg0: i32, %arg1: i32) -> (i32, i32, i32) {
    %c0_i32 = arith.constant 0 : i32
    %c0_i32_0 = arith.constant 0 : i32
    return %arg0, %arg1, %c0_i32 : i32, i32, i32
  }
}

</mosaic_0001>

<llo_original>
// kernel: tpu_custom_call.1
$region0: #{tpu_custom_call.1}
  #allocation0 [shape = 'u32[]', space=smem, size = 0x4, offset = 0x4, fixed_abs, tag = 'smem constant byte address 0x4 - core index']
  #allocation1 [shape = 'u32[72,128]{1,0:T(1,128)}', space=vmem, size = 0x9000, scoped, tag = 'internal scratch']
  #allocation2 [shape = 'bf16[16,128]{1,0:T(8,128)(2,1)}', space=vmem, size = 0x1000, scoped, tag = 'scratch operand']
  %s0 = inlined_call_operand.hbm [shape: bf16[2,16,16], index: 0, kind: input, shape index: {}]
  %s1 = inlined_call_operand.hbm [shape: bf16[2,16,128], index: 1, kind: input, shape index: {}]
  %s2 = inlined_call_operand.hbm [shape: bf16[128,128], index: 2, kind: input, shape index: {}]
  %s3 = inlined_call_operand.vmem [shape: f32[1,128], index: 3, kind: input, shape index: {}]
  %s4 = inlined_call_operand.vmem [shape: f32[1,128], index: 4, kind: input, shape index: {}]
  %s5 = inlined_call_operand.vmem [shape: f32[1,128], index: 5, kind: input, shape index: {}]
  %s6 = inlined_call_operand.hbm [shape: f32[2,16,128], index: 6, kind: output, shape index: {}]
  %s7 = sld [smem:[#allocation0]]
  $region73: #{tpu_custom_call.1} parent=0
    _
  %s9 = ssub.s32 1, %s7
  %s10 = scalar_select 0, %s9, %s7
  $region1: #{tpu_custom_call.1} parent=0
    #allocation3 [shape = 'u8[8192]{0}', space=vmem, size = 0x2000, scoped, tag = 'input window, operand 0']
    #allocation4 [shape = 's32[2]{0}', space=sflag, size = 0x8, scoped, tag = 'scoped memory for tpu_custom_call.1']
    #allocation5 [shape = 's32[2]{0}', space=sflag, size = 0x8, scoped, tag = 'scoped memory for tpu_custom_call.1']
    #allocation6 [shape = 'u8[8192]{0}', space=vmem, size = 0x2000, scoped, tag = 'input window, operand 1']
    #allocation7 [shape = 's32[2]{0}', space=sflag, size = 0x8, scoped, tag = 'scoped memory for tpu_custom_call.1']
    #allocation8 [shape = 'u8[32768]{0}', space=vmem, size = 0x8000, scoped, tag = 'input window, operand 2, single buffered']
    #allocation9 [shape = 'u8[16384]{0}', space=vmem, size = 0x4000, scoped, tag = 'output window, operand 0']
    %11 = vsyncpa [#allocation4], 0
    %s12 = scalar_lea.sflag [#allocation4], 1
    %13 = vsyncpa %s12, 0
    %14 = vsyncpa [#allocation7], 0
    %s15 = scalar_lea.sflag [#allocation7], 1
    %16 = vsyncpa %s15, 0
    %17 = vsyncpa [#allocation5], 0
    %s18 = scalar_lea.sflag [#allocation5], 1
    %19 = vsyncpa %s18, 0
    loop: start=0, step=1, limit=4
    $region2: #{tpu_custom_call.1} parent=1 // loop_pre_header
      _
    $region3: #{tpu_custom_call.1} parent=1 // loop_header
      %s21 = sphi 0, %s25
      %p22 = scmp.ge.s32.totalorder %s21, 4
      %s28 = sphi 0, %s40
      %s29 = sphi 0, %s36
      %s30 = sphi 0, %s28
      %s31 = sphi 0, %s29
      %s32 = sphi 0, %s30
      %s33 = sphi 0, %s31
      %s45 = sphi 0, %s47
      %s48 = sphi 0, %s45
      %s49 = sphi 0, %s48
      %s65 = sphi 0, %s49
      %s71 = sphi 0, %s73
      %s74 = sphi 0, %s71
      %s75 = sphi 0, %s74
      %s91 = sphi 0, %s75
      %s95 = sphi 0, %s95
      %s97 = sphi 0, %s95
      %s98 = sphi 0, %s97
      %s112 = sphi 0, %s98
      %s116 = sphi 0, %s116
      %s118 = sphi 0, %s116
      %s119 = sphi 0, %s118
      %s133 = sphi 0, %s119
      %s137 = sphi 0, %s137
      %s139 = sphi 0, %s137
      %s140 = sphi 0, %s139
      %s154 = sphi 0, %s140
      %s158 = sphi 0, %s158
      %s160 = sphi 0, %s158
      %s161 = sphi 0, %s160
      %s175 = sphi 0, %s161
      %s183 = sphi 0, %s185
      %s186 = sphi 0, %s183
      %s187 = sphi 0, %s186
      %s203 = sphi 0, %s187
    $region4: #{tpu_custom_call.1} parent=1 // loop_header_branch
      %24 = sbr.rel (%p22) target = $region8
    $region5: #{tpu_custom_call.1} parent=1 // loop_body
      %s26 = ssub.s32 %s21, 1
      %s27 = ssub.s32 %s21, 2
      %s34 = sadd.s32 1, %s29
      %p35 = scmp.ge.s32.totalorder %s34, 1
      %s36 = scalar_select %p35, 0, %s34
      %s37 = sadd.s32 1, %s28
      %s38 = scalar_select %p35, %s37, %s28
      %p39 = scmp.ge.s32.totalorder %s38, 2
      %s40 = scalar_select %p39, 0, %s38
      %s41 = ssub.s32 %s28, %s40
      %s42 = ssub.s32 %s29, %s36
      %s43 = sor.u32 %s41, %s42
      %p44 = scmp.eq.s32.totalorder %s43, 0
      %s46 = sadd.s32 %s45, 1
      %s47 = scalar_select %p44, %s45, %s46
      %p50 = pneg %p44
      %p51 = scmp.eq.s32.totalorder %s21, 1
      %p52 = por %p50, %p51
      %p53 = scmp.ne.s32.totalorder %s45, %s48
      %p54 = scmp.eq.s32.totalorder %s21, 0
      %p55 = por %p53, %p54
      %p56 = scmp.ne.s32.totalorder %s45, %s48
      %p57 = scmp.eq.s32.totalorder %s26, 1
      %p58 = por %p56, %p57
      %p59 = scmp.ne.s32.totalorder %s48, %s49
      %p60 = scmp.eq.s32.totalorder %s26, 0
      %p61 = por %p59, %p60
      %p62 = scmp.ne.s32.totalorder %s48, %s49
      %p63 = scmp.eq.s32.totalorder %s27, 1
      %p64 = por %p62, %p63
      %p66 = scmp.ne.s32.totalorder %s49, %s65
      %p67 = scmp.eq.s32.totalorder %s27, 0
      %p68 = por %p66, %p67
      %s69 = ssub.s32 %s28, %s40
      %p70 = scmp.eq.s32.totalorder %s69, 0
      %s72 = sadd.s32 %s71, 1
      %s73 = scalar_select %p70, %s71, %s72
      %p76 = pneg %p70
      %p77 = scmp.eq.s32.totalorder %s21, 1
      %p78 = por %p76, %p77
      %p79 = scmp.ne.s32.totalorder %s71, %s74
      %p80 = scmp.eq.s32.totalorder %s21, 0
      %p81 = por %p79, %p80
      %p82 = scmp.ne.s32.totalorder %s71, %s74
      %p83 = scmp.eq.s32.totalorder %s26, 1
      %p84 = por %p82, %p83
      %p85 = scmp.ne.s32.totalorder %s74, %s75
      %p86 = scmp.eq.s32.totalorder %s26, 0
      %p87 = por %p85, %p86
      %p88 = scmp.ne.s32.totalorder %s74, %s75
      %p89 = scmp.eq.s32.totalorder %s27, 1
      %p90 = por %p88, %p89
      %p92 = scmp.ne.s32.totalorder %s75, %s91
      %p93 = scmp.eq.s32.totalorder %s27, 0
      %p94 = por %p92, %p93
      %s96 = sadd.s32 %s95, 1
      %p99 = scmp.eq.s32.totalorder %s21, 1
      %p100 = scmp.ne.s32.totalorder %s95, %s97
      %p101 = scmp.eq.s32.totalorder %s21, 0
      %p102 = por %p100, %p101
      %p103 = scmp.ne.s32.totalorder %s95, %s97
      %p104 = scmp.eq.s32.totalorder %s26, 1
      %p105 = por %p103, %p104
      %p106 = scmp.ne.s32.totalorder %s97, %s98
      %p107 = scmp.eq.s32.totalorder %s26, 0
      %p108 = por %p106, %p107
      %p109 = scmp.ne.s32.totalorder %s97, %s98
      %p110 = scmp.eq.s32.totalorder %s27, 1
      %p111 = por %p109, %p110
      %p113 = scmp.ne.s32.totalorder %s98, %s112
      %p114 = scmp.eq.s32.totalorder %s27, 0
      %p115 = por %p113, %p114
      %s117 = sadd.s32 %s116, 1
      %p120 = scmp.eq.s32.totalorder %s21, 1
      %p121 = scmp.ne.s32.totalorder %s116, %s118
      %p122 = scmp.eq.s32.totalorder %s21, 0
      %p123 = por %p121, %p122
      %p124 = scmp.ne.s32.totalorder %s116, %s118
      %p125 = scmp.eq.s32.totalorder %s26, 1
      %p126 = por %p124, %p125
      %p127 = scmp.ne.s32.totalorder %s118, %s119
      %p128 = scmp.eq.s32.totalorder %s26, 0
      %p129 = por %p127, %p128
      %p130 = scmp.ne.s32.totalorder %s118, %s119
      %p131 = scmp.eq.s32.totalorder %s27, 1
      %p132 = por %p130, %p131
      %p134 = scmp.ne.s32.totalorder %s119, %s133
      %p135 = scmp.eq.s32.totalorder %s27, 0
      %p136 = por %p134, %p135
      %s138 = sadd.s32 %s137, 1
      %p141 = scmp.eq.s32.totalorder %s21, 1
      %p142 = scmp.ne.s32.totalorder %s137, %s139
      %p143 = scmp.eq.s32.totalorder %s21, 0
      %p144 = por %p142, %p143
      %p145 = scmp.ne.s32.totalorder %s137, %s139
      %p146 = scmp.eq.s32.totalorder %s26, 1
      %p147 = por %p145, %p146
      %p148 = scmp.ne.s32.totalorder %s139, %s140
      %p149 = scmp.eq.s32.totalorder %s26, 0
      %p150 = por %p148, %p149
      %p151 = scmp.ne.s32.totalorder %s139, %s140
      %p152 = scmp.eq.s32.totalorder %s27, 1
      %p153 = por %p151, %p152
      %p155 = scmp.ne.s32.totalorder %s140, %s154
      %p156 = scmp.eq.s32.totalorder %s27, 0
      %p157 = por %p155, %p156
      %s159 = sadd.s32 %s158, 1
      %p162 = scmp.eq.s32.totalorder %s21, 1
      %p163 = scmp.ne.s32.totalorder %s158, %s160
      %p164 = scmp.eq.s32.totalorder %s21, 0
      %p165 = por %p163, %p164
      %p166 = scmp.ne.s32.totalorder %s158, %s160
      %p167 = scmp.eq.s32.totalorder %s26, 1
      %p168 = por %p166, %p167
      %p169 = scmp.ne.s32.totalorder %s160, %s161
      %p170 = scmp.eq.s32.totalorder %s26, 0
      %p171 = por %p169, %p170
      %p172 = scmp.ne.s32.totalorder %s160, %s161
      %p173 = scmp.eq.s32.totalorder %s27, 1
      %p174 = por %p172, %p173
      %p176 = scmp.ne.s32.totalorder %s161, %s175
      %p177 = scmp.eq.s32.totalorder %s27, 0
      %p178 = por %p176, %p177
      %s179 = ssub.s32 %s28, %s40
      %s180 = ssub.s32 %s29, %s36
      %s181 = sor.u32 %s179, %s180
      %p182 = scmp.eq.s32.totalorder %s181, 0
      %s184 = sadd.s32 %s183, 1
      %s185 = scalar_select %p182, %s183, %s184
      %p188 = pneg %p182
      %p189 = scmp.eq.s32.totalorder %s21, 1
      %p190 = por %p188, %p189
      %p191 = scmp.ne.s32.totalorder %s183, %s186
      %p192 = scmp.eq.s32.totalorder %s21, 0
      %p193 = por %p191, %p192
      %p194 = scmp.ne.s32.totalorder %s183, %s186
      %p195 = scmp.eq.s32.totalorder %s26, 1
      %p196 = por %p194, %p195
      %p197 = scmp.ne.s32.totalorder %s186, %s187
      %p198 = scmp.eq.s32.totalorder %s26, 0
      %p199 = por %p197, %p198
      %p200 = scmp.ne.s32.totalorder %s186, %s187
      %p201 = scmp.eq.s32.totalorder %s27, 1
      %p202 = por %p200, %p201
      %p204 = scmp.ne.s32.totalorder %s187, %s203
      %p205 = scmp.eq.s32.totalorder %s27, 0
      %p206 = por %p204, %p205
      %p207 = scmp.le.s32.totalorder 1, %s21
      %p208 = scmp.lt.s32.totalorder %s21, 3
      %p209 = pnand %p207, %p208
      %p210 = pneg %p209
      // Predicated region
      $region9: #{tpu_custom_call.1} parent=5 // pred_check
        _
      $region10: #{tpu_custom_call.1} parent=5 // pred_check_branch
        %212 = sbr.rel (%p209) target = $region12
      $region11: #{tpu_custom_call.1} parent=5 // pred_region
        %s213 = ssub.s32 %s21, 1
        // Predicated region
        $region13: #{tpu_custom_call.1} parent=11 // pred_check
          %p214 = pneg %p108
        $region14: #{tpu_custom_call.1} parent=11 // pred_check_branch
          %216 = sbr.rel (%p214) target = $region16
        $region15: #{tpu_custom_call.1} parent=11 // pred_region
          %218 = vsyncadd [#allocation7], 0
          %s219 = sshll.u32 %s2, 4
          %s220 = int_to_ptr.hbm [resolvable:$true] %s219
          %s221 = sshll.u32 [#allocation8], 4
          %s222 = int_to_ptr.vmem [resolvable:$true] %s221
          %227 = dma.hbm_to_vmem [thread:$0]  %s220, 1024, %s222, [#allocation7], 64, 64, 4
        $region16: #{tpu_custom_call.1} parent=11 // pred_fallthru
          _
        // Predicated region
        $region17: #{tpu_custom_call.1} parent=11 // pred_check
          %p228 = pneg %p129
        $region18: #{tpu_custom_call.1} parent=11 // pred_check_branch
          %230 = sbr.rel (%p228) target = $region20
        $region19: #{tpu_custom_call.1} parent=11 // pred_region
          _
        $region20: #{tpu_custom_call.1} parent=11 // pred_fallthru
          _
        // Predicated region
        $region21: #{tpu_custom_call.1} parent=11 // pred_check
          %p231 = pneg %p150
        $region22: #{tpu_custom_call.1} parent=11 // pred_check_branch
          %233 = sbr.rel (%p231) target = $region24
        $region23: #{tpu_custom_call.1} parent=11 // pred_region
          _
        $region24: #{tpu_custom_call.1} parent=11 // pred_fallthru
          _
        // Predicated region
        $region25: #{tpu_custom_call.1} parent=11 // pred_check
          %p234 = pneg %p171
        $region26: #{tpu_custom_call.1} parent=11 // pred_check_branch
          %236 = sbr.rel (%p234) target = $region28
        $region27: #{tpu_custom_call.1} parent=11 // pred_region
          _
        $region28: #{tpu_custom_call.1} parent=11 // pred_fallthru
          _
      $region12: #{tpu_custom_call.1} parent=5 // pred_fallthru
        _
      %p237 = scmp.lt.s32.totalorder %s21, 2
      // Predicated region
      $region29: #{tpu_custom_call.1} parent=5 // pred_check
        %p238 = pneg %p237
      $region30: #{tpu_custom_call.1} parent=5 // pred_check_branch
        %240 = sbr.rel (%p238) target = $region32
      $region31: #{tpu_custom_call.1} parent=5 // pred_region
        // Predicated region
        $region33: #{tpu_custom_call.1} parent=31 // pred_check
          %p241 = pneg %p55
        $region34: #{tpu_custom_call.1} parent=31 // pred_check_branch
          %243 = sbr.rel (%p241) target = $region36
        $region35: #{tpu_custom_call.1} parent=31 // pred_region
          %s244 = sand.u32 %s45, 1
          %s245 = scalar_lea.sflag [#allocation4], %s244
          %s246 = sand.u32 %s45, 1
          %s247 = smul.addr %s246, 8
          %s248 = scalar_lea.vmem [#allocation3], %s247
          %s249 = smul.u32 2, %s29
          %251 = vsyncadd %s245, 0
          %s252 = smul.addr %s28, 2
          %s253 = sadd.s32 %s249, %s252
          %s254 = smul.addr %s253, 4
          %s255 = scalar_lea.hbm %s0, %s254
          %s256 = sshll.u32 %s255, 4
          %s257 = int_to_ptr.hbm [resolvable:$true] %s256
          %s258 = sshll.u32 %s248, 4
          %s259 = int_to_ptr.vmem [resolvable:$true] %s258
          %264 = dma.hbm_to_vmem [thread:$0]  %s257, 128, %s259, %s245, 64, 64, 4
        $region36: #{tpu_custom_call.1} parent=31 // pred_fallthru
          _
        // Predicated region
        $region37: #{tpu_custom_call.1} parent=31 // pred_check
          %p265 = pneg %p81
        $region38: #{tpu_custom_call.1} parent=31 // pred_check_branch
          %267 = sbr.rel (%p265) target = $region40
        $region39: #{tpu_custom_call.1} parent=31 // pred_region
          %s268 = sand.u32 %s21, 1
          %s269 = scalar_lea.sflag [#allocation7], %s268
          %s270 = sand.u32 %s71, 1
          %s271 = smul.addr %s270, 8
          %s272 = scalar_lea.vmem [#allocation6], %s271
          %274 = vsyncadd %s269, 0
          %s275 = smul.addr %s28, 2
          %s276 = smul.addr %s275, 4
          %s277 = scalar_lea.hbm %s1, %s276
          %s278 = sshll.u32 %s277, 4
          %s279 = int_to_ptr.hbm [resolvable:$true] %s278
          %s280 = sshll.u32 %s272, 4
          %s281 = int_to_ptr.vmem [resolvable:$true] %s280
          %286 = dma.hbm_to_vmem [thread:$0]  %s279, 128, %s281, %s269, 64, 64, 4
        $region40: #{tpu_custom_call.1} parent=31 // pred_fallthru
          _
      $region32: #{tpu_custom_call.1} parent=5 // pred_fallthru
        _
      %p287 = scmp.le.s32.totalorder 1, %s21
      %p288 = scmp.lt.s32.totalorder %s21, 3
      %p289 = pnand %p287, %p288
      %p290 = pneg %p289
      // Predicated region
      $region41: #{tpu_custom_call.1} parent=5 // pred_check
        _
      $region42: #{tpu_custom_call.1} parent=5 // pred_check_branch
        %292 = sbr.rel (%p289) target = $region44
      $region43: #{tpu_custom_call.1} parent=5 // pred_region
        %s293 = ssub.s32 %s21, 1
        %s294 = sand.u32 %s48, 1
        %s295 = scalar_lea.sflag [#allocation4], %s294
        %s296 = sand.u32 %s48, 1
        %s297 = smul.addr %s296, 8
        %s298 = scalar_lea.vmem [#allocation3], %s297
        // Predicated region
        $region45: #{tpu_custom_call.1} parent=43 // pred_check
          %p299 = pneg %p61
        $region46: #{tpu_custom_call.1} parent=43 // pred_check_branch
          %301 = sbr.rel (%p299) target = $region48
        $region47: #{tpu_custom_call.1} parent=43 // pred_region
          %303 = dma.done %s295, 128
        $region48: #{tpu_custom_call.1} parent=43 // pred_fallthru
          _
        %s304 = sand.u32 %s26, 1
        %s305 = scalar_lea.sflag [#allocation7], %s304
        %s306 = sand.u32 %s74, 1
        %s307 = smul.addr %s306, 8
        %s308 = scalar_lea.vmem [#allocation6], %s307
        // Predicated region
        $region49: #{tpu_custom_call.1} parent=43 // pred_check
          %p309 = pneg %p87
        $region50: #{tpu_custom_call.1} parent=43 // pred_check_branch
          %311 = sbr.rel (%p309) target = $region52
        $region51: #{tpu_custom_call.1} parent=43 // pred_region
          %313 = dma.done %s305, 128
        $region52: #{tpu_custom_call.1} parent=43 // pred_fallthru
          _
        // Predicated region
        $region53: #{tpu_custom_call.1} parent=43 // pred_check
          %p314 = pneg %p108
        $region54: #{tpu_custom_call.1} parent=43 // pred_check_branch
          %316 = sbr.rel (%p314) target = $region56
        $region55: #{tpu_custom_call.1} parent=43 // pred_region
          %318 = dma.done [#allocation7], 1024
        $region56: #{tpu_custom_call.1} parent=43 // pred_fallthru
          _
        %s319 = sand.u32 %s48, 1
        %s320 = scalar_lea.sflag [#allocation4], %s319
        %s321 = sand.u32 %s48, 1
        %s322 = smul.addr %s321, 8
        %s323 = scalar_lea.vmem [#allocation3], %s322
        %p324 = pneg %p61
        %p325 = pneg %p58
        %s326 = sand.u32 %s26, 1
        %s327 = scalar_lea.sflag [#allocation7], %s326
        %s328 = sand.u32 %s74, 1
        %s329 = smul.addr %s328, 8
        %s330 = scalar_lea.vmem [#allocation6], %s329
        %p331 = pneg %p87
        %p332 = pneg %p84
        %p333 = pneg %p108
        %p334 = pneg %p105
        %p335 = pneg %p129
        %p336 = pneg %p126
        %p337 = pneg %p150
        %p338 = pneg %p147
        %p339 = pneg %p171
        %p340 = pneg %p168
        %p341 = pneg %p199
        %p342 = pneg %p196
        %s343 = sand.u32 %s186, 1
        %s344 = scalar_lea.sflag [#allocation5], %s343
        %s345 = sand.u32 %s186, 1
        %s346 = smul.addr %s345, 16
        %s347 = scalar_lea.vmem [#allocation9], %s346
        %s348 = smul.u32 2, %s31
        %s349 = smul.u32 2, %s31
        %p351 = scmp.eq.s32.totalorder %s31, 0
        // Predicated region
        $region57: #{tpu_custom_call.1} parent=43 // pred_check
          %p352 = pneg %p351
        $region58: #{tpu_custom_call.1} parent=43 // pred_check_branch
          %354 = sbr.rel (%p352) target = $region60
        $region59: #{tpu_custom_call.1} parent=43 // pred_region
          %v355 = vld [vmem:[%s308] sm:$0xf]
          %v356 = vld [vmem:[%s308 + $0x4] sm:$0xf]
          %v357 = vld [vmem:[#allocation8] sm:$0xf]
          %v358 = vld [vmem:[#allocation8 + $0x4] sm:$0xf]
          %v359 = vld [vmem:[#allocation8 + $0x8] sm:$0xf]
          %v360 = vld [vmem:[#allocation8 + $0xc] sm:$0xf]
          %v361 = vld [vmem:[#allocation8 + $0x10] sm:$0xf]
          %v362 = vld [vmem:[#allocation8 + $0x14] sm:$0xf]
          %v363 = vld [vmem:[#allocation8 + $0x18] sm:$0xf]
          %v364 = vld [vmem:[#allocation8 + $0x1c] sm:$0xf]
          %v365 = vld [vmem:[#allocation8 + $0x20] sm:$0xf]
          %v366 = vld [vmem:[#allocation8 + $0x24] sm:$0xf]
          %v367 = vld [vmem:[#allocation8 + $0x28] sm:$0xf]
          %v368 = vld [vmem:[#allocation8 + $0x2c] sm:$0xf]
          %v369 = vld [vmem:[#allocation8 + $0x30] sm:$0xf]
          %v370 = vld [vmem:[#allocation8 + $0x34] sm:$0xf]
          %v371 = vld [vmem:[#allocation8 + $0x38] sm:$0xf]
          %v372 = vld [vmem:[#allocation8 + $0x3c] sm:$0xf]
          %v375 = vunpack.c.l.b16 %v355
          %v376 = vunpack.c.l.b16 %v356
          %v377 = vpack.c.b16 %v376, %v375
          %v395 = vunpack.c.l.b16 %v357
          %v396 = vunpack.c.l.b16 %v358
          %v397 = vunpack.c.l.b16 %v359
          %v398 = vunpack.c.l.b16 %v360
          %v399 = vunpack.c.l.b16 %v361
          %v400 = vunpack.c.l.b16 %v362
          %v401 = vunpack.c.l.b16 %v363
          %v402 = vunpack.c.l.b16 %v364
          %v403 = vunpack.c.l.b16 %v365
          %v404 = vunpack.c.l.b16 %v366
          %v405 = vunpack.c.l.b16 %v367
          %v406 = vunpack.c.l.b16 %v368
          %v407 = vunpack.c.l.b16 %v369
          %v408 = vunpack.c.l.b16 %v370
          %v409 = vunpack.c.l.b16 %v371
          %v410 = vunpack.c.l.b16 %v372
          %v411 = vpack.c.b16 %v396, %v395
          %v412 = vpack.c.b16 %v398, %v397
          %v413 = vpack.c.b16 %v400, %v399
          %v414 = vpack.c.b16 %v402, %v401
          %v415 = vpack.c.b16 %v404, %v403
          %v416 = vpack.c.b16 %v406, %v405
          %v417 = vpack.c.b16 %v408, %v407
          %v418 = vpack.c.b16 %v410, %v409
          %427 = vmatpush.bf16.msra.mxu0 %v418
          %428 = vmatpush.bf16.msra.mxu0 %v417
          %429 = vmatpush.bf16.msra.mxu0 %v416
          %430 = vmatpush.bf16.msra.mxu0 %v415
          %431 = vmatpush.bf16.msra.mxu0 %v414
          %432 = vmatpush.bf16.msra.mxu0 %v413
          %433 = vmatpush.bf16.msra.mxu0 %v412
          %434 = vmatpush.bf16.msra.mxu0 %v411
          %435 = vmatmul.bf16.gmra.mxu0 %v377
          %v436 = vpop.f32.mrf.mxu0
          %v437 = vadd.f32 0.0, %v436
          %v438 = vpop.f32.mrf.mxu0
          %v439 = vadd.f32 0.0, %v438
          %440 = vdwg.mxu0
          %v441 = vpack.c.bf16 %v437, %v437
          %v442 = vpack.c.bf16 %v439, %v439
          %443 = vst [vmem:[#allocation2] sm:$0xf] %v441
          %444 = vst [vmem:[#allocation2 + $0x4] sm:$0xf] %v442
        $region60: #{tpu_custom_call.1} parent=43 // pred_fallthru
          _
        %v445 = vld [vmem:[%s298] sm:$0xf]
        %v446 = vld [vmem:[%s298 + $0x4] sm:$0xf]
        %v447 = vld [vmem:[#allocation2] sm:$0xf]
        %v448 = vld [vmem:[#allocation2 + $0x4] sm:$0xf]
        %v449 = vld [vmem:[%s3] sm:$0x1]
        %v451 = vperm.slane %v449, 0
        %v455 = vunpack.c.l.b16 %v445
        %v456 = vunpack.c.l.b16 %v446
        %v457 = vpack.c.b16 %v456, %v455
        %v460 = vunpack.c.l.b16 %v447
        %v461 = vunpack.c.l.b16 %v448
        %v462 = vpack.c.b16 %v461, %v460
        %vm464 = vcmask 130048
        %v466 = vsel %vm464, %v457, 0
        %468 = vmatpush.bf16.msra.mxu0 0
        %469 = vmatpush.bf16.msra.mxu0 0
        %470 = vmatpush.bf16.msra.mxu0 0
        %471 = vmatpush.bf16.msra.mxu0 0
        %472 = vmatpush.bf16.msra.mxu0 0
        %473 = vmatpush.bf16.msra.mxu0 0
        %474 = vmatpush.bf16.msra.mxu0 0
        %475 = vmatpush.bf16.msra.mxu0 %v462
        %476 = vmatmul.bf16.gmra.mxu0 %v466
        %v477 = vpop.f32.mrf.mxu0
        %v478 = vadd.f32 %v451, %v477
        %v479 = vpop.f32.mrf.mxu0
        %v480 = vadd.f32 %v451, %v479
        %481 = vdwg.mxu0
        %v482 = vld [vmem:[%s4] sm:$0x1]
        %v483 = vld [vmem:[%s5] sm:$0x1]
        %484 = vadd.xlane.f32.xlu0 %v478
        %v485 = vpop.xlane.xlu0 %484
        %486 = vadd.xlane.f32.xlu0 %v480
        %v487 = vpop.xlane.xlu0 %486
        %v488 = vmul.f32 %v485, 0.03125
        %v489 = vmul.f32 %v487, 0.03125
        %v490 = vlaneseq
        %v491 = vand.u32 %v490, 127
        %vm492 = vcmp.lt.s32.totalorder %v491, 32
        %v493 = vsub.f32 %v478, %v488
        %v494 = vsub.f32 %v480, %v489
        %v495 = vsel %vm492, %v493, 0.0
        %v496 = vsel %vm492, %v494, 0.0
        %v497 = vmul.f32 %v495, %v495
        %v498 = vmul.f32 %v496, %v496
        %499 = vadd.xlane.f32.xlu0 %v497
        %v500 = vpop.xlane.xlu0 %499
        %501 = vadd.xlane.f32.xlu0 %v498
        %v502 = vpop.xlane.xlu0 %501
        %v503 = vmul.f32 %v500, 0.03125
        %v504 = vmul.f32 %v502, 0.03125
        %v505 = vadd.f32 %v503, 1e-05
        %v506 = vadd.f32 %v504, 1e-05
        %v507 = vrsqrt.pop %v505
        %v508 = vmul.f32 %v507, %v505
        %v509 = vmul.f32 %v508, %v507
        %v510 = vmul.f32 0.5, %v509
        %v511 = vsub.f32 1.5, %v510
        %v512 = vmul.f32 %v507, %v511
        %vm513 = vweird.f32 %v505
        %vm514 = vweird.f32 %v507
        %vm515 = vmor %vm513, %vm514
        %v516 = vsel %vm515, %v507, %v512
        %v517 = vrsqrt.pop %v506
        %v518 = vmul.f32 %v517, %v506
        %v519 = vmul.f32 %v518, %v517
        %v520 = vmul.f32 0.5, %v519
        %v521 = vsub.f32 1.5, %v520
        %v522 = vmul.f32 %v517, %v521
        %vm523 = vweird.f32 %v506
        %vm524 = vweird.f32 %v517
        %vm525 = vmor %vm523, %vm524
        %v526 = vsel %vm525, %v517, %v522
        %v527 = vmul.f32 %v495, %v516
        %v528 = vmul.f32 %v496, %v526
        %v530 = vperm.slane %v482, 0
        %v532 = vmul.f32 %v527, %v530
        %v533 = vmul.f32 %v528, %v530
        %v535 = vperm.slane %v483, 0
        %v537 = vadd.f32 %v532, %v535
        %v538 = vadd.f32 %v533, %v535
        %v539 = vmax.f32 %v537, 0.0
        %v540 = vmax.f32 %v538, 0.0
        %541 = vst [vmem:[%s347] sm:$0xff] %v539
        %542 = vst [vmem:[%s347 + $0x8] sm:$0xff] %v540
        %s543 = sand.u32 %s186, 1
        %s544 = scalar_lea.sflag [#allocation5], %s543
        %s545 = sand.u32 %s186, 1
        %s546 = smul.addr %s545, 16
        %s547 = scalar_lea.vmem [#allocation9], %s546
        // Predicated region
        $region61: #{tpu_custom_call.1} parent=43 // pred_check
          %p548 = pneg %p196
        $region62: #{tpu_custom_call.1} parent=43 // pred_check_branch
          %550 = sbr.rel (%p548) target = $region64
        $region63: #{tpu_custom_call.1} parent=43 // pred_region
          %s551 = smul.u32 2, %s31
          %553 = vsyncadd %s544, 0
          %s554 = smul.addr %s30, 2
          %s555 = sadd.s32 %s551, %s554
          %s556 = smul.addr %s555, 8
          %s557 = scalar_lea.hbm %s6, %s556
          %s558 = sshll.u32 %s547, 4
          %s559 = int_to_ptr.vmem [resolvable:$true] %s558
          %s560 = sshll.u32 %s557, 4
          %s561 = int_to_ptr.hbm [resolvable:$true] %s560
          %566 = dma.vmem_to_hbm [thread:$0]  %s559, 256, %s561, %s544, 128, 128, 8
        $region64: #{tpu_custom_call.1} parent=43 // pred_fallthru
          _
      $region44: #{tpu_custom_call.1} parent=5 // pred_fallthru
        _
      %p567 = scmp.le.s32.totalorder 2, %s21
      // Predicated region
      $region65: #{tpu_custom_call.1} parent=5 // pred_check
        %p568 = pneg %p567
      $region66: #{tpu_custom_call.1} parent=5 // pred_check_branch
        %570 = sbr.rel (%p568) target = $region68
      $region67: #{tpu_custom_call.1} parent=5 // pred_region
        %s571 = ssub.s32 %s21, 2
        // Predicated region
        $region69: #{tpu_custom_call.1} parent=67 // pred_check
          %p572 = pneg %p202
        $region70: #{tpu_custom_call.1} parent=67 // pred_check_branch
          %574 = sbr.rel (%p572) target = $region72
        $region71: #{tpu_custom_call.1} parent=67 // pred_region
          %s575 = sand.u32 %s187, 1
          %s576 = scalar_lea.sflag [#allocation5], %s575
          %s577 = sand.u32 %s187, 1
          %s578 = smul.addr %s577, 16
          %s579 = scalar_lea.vmem [#allocation9], %s578
          %581 = dma.done %s576, 256
        $region72: #{tpu_custom_call.1} parent=67 // pred_fallthru
          _
      $region68: #{tpu_custom_call.1} parent=5 // pred_fallthru
        _
    $region6: #{tpu_custom_call.1} parent=1 // loop_footer
      %s25 = sadd.s32 1, %s21
    $region7: #{tpu_custom_call.1} parent=1 // loop_footer_branch
      %20 = sbr.rel target = $region3
    $region8: #{tpu_custom_call.1} parent=1 // loop_exit
      _
    %582 = vsyncpa [#allocation4], 1
    %s583 = scalar_lea.sflag [#allocation4], 1
    %584 = vsyncpa %s583, 1
    %585 = vsyncpa [#allocation7], 1
    %s586 = scalar_lea.sflag [#allocation7], 1
    %587 = vsyncpa %s586, 1
    %588 = vsyncpa [#allocation5], 1
    %s589 = scalar_lea.sflag [#allocation5], 1
    %590 = vsyncpa %s589, 1

</llo_original>
